<compile_context>
chip_gen: v7x
topology: tpu7x:2x2x1
jax: 0.10.0
libtpu: 0.0.40
codegen_flags: <defaults>
</compile_context>

<pallas_src>
import jax
import jax.numpy as jnp
from jax.experimental import pallas as pl
from jax.experimental.pallas import tpu as pltpu


def _patch_embed_kernel(x_ref, w_ref, pe_ref, o_ref):
    # x_ref:  (tm, K_pad)     flattened patch rows (tm may span several images)
    # w_ref:  (K_pad, hidden) projection weights, constant block index (resident)
    # pe_ref: (tp, hidden)    positional embedding with the conv bias folded in
    # o_ref:  (tm, hidden)
    acc = jnp.dot(x_ref[...], w_ref[...], preferred_element_type=jnp.float32)
    pe = pe_ref[...].astype(jnp.float32)
    tm = o_ref.shape[0]
    tp = pe_ref.shape[0]
    if tm == tp:
        acc = acc + pe
    else:
        # One row tile covers tm // tp full images; broadcast the resident pe
        # slab over them (free reshape: tp is a multiple of 8, lane dim fixed).
        h = acc.shape[1]
        acc = (acc.reshape(tm // tp, tp, h) + pe[None]).reshape(tm, h)
    o_ref[...] = acc.astype(o_ref.dtype)


def _hw_budget():
    """(row_tile_cap, vmem_limit_bytes) sized per TPU generation."""
    try:
        cap = int(getattr(pltpu.get_tpu_info(), "vmem_capacity_bytes", 0))
    except Exception:
        cap = 0
    if cap >= 100 * 1024 * 1024:          # v5e / v6e: 128 MiB VMEM
        return 1024, 64 * 1024 * 1024
    if cap > 0:                           # v7x: 64 MiB per TensorCore
        return 512, min(48 * 1024 * 1024, cap * 3 // 4)
    return 512, 32 * 1024 * 1024          # unknown backend: stay conservative


def vit_embedding_forward(x, conv_w, conv_b, pe, patch_size,
                          compute_dtype=None, row_cap=None, vmem_limit=None):
    """Fused ViT patch embedding (classifier='gap' path).

    x:       (B, C, H, W)
    conv_w:  (hidden, C, fh, fw)   -- PyTorch Conv2d weight layout
    conv_b:  (hidden,)
    pe:      (1, seq, hidden) with seq = (H//fh) * (W//fw)
    returns  (B, seq, hidden) in x.dtype
    """
    B, C, H, W = x.shape
    fh, fw = patch_size
    hidden = conv_w.shape[0]
    gh, gw = H // fh, W // fw
    seq = gh * gw
    K = C * fh * fw
    assert pe.shape == (1, seq, hidden)

    if compute_dtype is None:
        compute_dtype = x.dtype
    out_dtype = x.dtype

    cap_default, vmem_default = _hw_budget()
    row_cap = row_cap or cap_default
    vmem_limit = vmem_limit or vmem_default

    seq_pad = -(-seq // 8) * 8        # pad seq to a multiple of 8 (no pe broadcast)
    K_pad = -(-K // 128) * 128        # pad K to a multiple of 128 (aligned MXU feed)

    # ---- layout plumbing (wrapper side, no compute) ----
    # Non-overlapping (fh, fw) patches, each flattened to a K-vector, row order
    # identical to reshape(B, hidden, gh*gw).permute(0, 2, 1).
    patches = (x.reshape(B, C, gh, fh, gw, fw)
                 .transpose(0, 2, 4, 1, 3, 5)       # (B, gh, gw, C, fh, fw)
                 .reshape(B, seq, K))
    if (seq_pad, K_pad) != (seq, K):
        patches = jnp.pad(patches, ((0, 0), (0, seq_pad - seq), (0, K_pad - K)))
    patches = patches.reshape(B * seq_pad, K_pad).astype(compute_dtype)

    w2 = conv_w.reshape(hidden, K).T                # (K, hidden)
    if K_pad != K:
        w2 = jnp.pad(w2, ((0, K_pad - K), (0, 0)))
    w2 = w2.astype(compute_dtype)

    # Fold the conv bias into the positional slab: one resident stream, one add.
    pe_b = pe[0].astype(jnp.float32) + conv_b.astype(jnp.float32)[None, :]
    if seq_pad != seq:
        pe_b = jnp.pad(pe_b, ((0, seq_pad - seq), (0, 0)))
    pe_b = pe_b.astype(compute_dtype)               # (seq_pad, hidden)

    # ---- tiling: 1-D grid over row tiles, W and (if possible) pe resident ----
    if seq_pad <= row_cap:
        # pe slab fully resident; a row tile covers m whole images.
        m = 1
        for cand in range(1, B + 1):
            if (B % cand == 0 and cand * seq_pad <= row_cap
                    and (B // cand >= 2 or B == 1)):     # keep >=2 tiles for v7x's 2 TCs
                m = cand
        tm, tp = m * seq_pad, seq_pad
        pe_index = lambda i: (0, 0)
    else:
        # seq itself must be split; pe tiles indexed modulo the per-image count.
        tm = 8
        for t in range(8, row_cap + 1, 8):
            if seq_pad % t == 0:
                tm = t
        tp = tm
        n_pe_blocks = seq_pad // tm
        pe_index = lambda i: (i % n_pe_blocks, 0)

    R_pad = B * seq_pad
    grid = (R_pad // tm,)

    out2d = pl.pallas_call(
        _patch_embed_kernel,
        out_shape=jax.ShapeDtypeStruct((R_pad, hidden), out_dtype),
        grid=grid,
        in_specs=[
            pl.BlockSpec((tm, K_pad), lambda i: (i, 0)),        # streamed patches
            pl.BlockSpec((K_pad, hidden), lambda i: (0, 0)),    # resident weights
            pl.BlockSpec((tp, hidden), pe_index),               # resident / tiled pe
        ],
        out_specs=pl.BlockSpec((tm, hidden), lambda i: (i, 0)),  # lane-dense output
        compiler_params=pltpu.CompilerParams(
            dimension_semantics=("parallel",),
            vmem_limit_bytes=vmem_limit,
        ),
    )(patches, w2, pe_b)

    out = out2d.reshape(B, seq_pad, hidden)
    if seq_pad != seq:
        out = out[:, :seq, :]
    return out


def _ref_forward(x, conv_w, conv_b, pe, patch_size):
    fh, fw = patch_size
    y = jax.lax.conv_general_dilated(
        x, conv_w, window_strides=(fh, fw), padding="VALID",
        dimension_numbers=("NCHW", "OIHW", "NCHW"))
    y = y + conv_b[None, :, None, None]
    B, hid, gh, gw = y.shape
    return y.reshape(B, hid, gh * gw).transpose(0, 2, 1) + pe


if __name__ == "__main__":
    # Small shapes consistent with the module:
    # inputs=(4, 16, 16), patches=(4, 4), hidden_size=32, batch=2 -> seq_len=16.
    key = jax.random.PRNGKey(0)
    k_x, k_w, k_b, k_pe, k_x9, k_pe9 = jax.random.split(key, 6)

    B, C, H, W = 2, 4, 16, 16
    fh, fw = 4, 4
    hidden = 32
    seq = (H // fh) * (W // fw)          # 16

    x = jax.random.normal(k_x, (B, C, H, W), dtype=jnp.float32)
    conv_w = jax.random.normal(k_w, (hidden, C, fh, fw), dtype=jnp.float32) * 0.1
    conv_b = jax.random.normal(k_b, (hidden,), dtype=jnp.float32) * 0.1
    pe = jax.random.normal(k_pe, (1, seq, hidden), dtype=jnp.float32)

    ref = _ref_forward(x, conv_w, conv_b, pe, (fh, fw))

    # 1) f32 compute path (resident pe, tm == seq_pad).  Tolerance accounts for
    #    default-precision f32 matmul/conv passes differing between kernel and ref.
    out = jax.block_until_ready(vit_embedding_forward(x, conv_w, conv_b, pe, (fh, fw)))
    assert out.shape == (B, seq, hidden)
    assert float(jnp.max(jnp.abs(out - ref))) < 5e-3

    # 2) bf16 MXU feed (halved DMA bytes, f32 accumulate in-kernel).
    out_bf16 = jax.block_until_ready(
        vit_embedding_forward(x, conv_w, conv_b, pe, (fh, fw), compute_dtype=jnp.bfloat16))
    assert float(jnp.max(jnp.abs(out_bf16.astype(jnp.float32) - ref))) < 5e-2

    # 3) multi-image row tile (tm = 2*seq_pad, in-kernel pe broadcast branch).
    x4 = jnp.concatenate([x, 0.5 * x], axis=0)
    ref4 = _ref_forward(x4, conv_w, conv_b, pe, (fh, fw))
    out4 = jax.block_until_ready(vit_embedding_forward(x4, conv_w, conv_b, pe, (fh, fw)))
    assert float(jnp.max(jnp.abs(out4 - ref4))) < 5e-3

    # 4) seq-split path (pe tiled with the modulo index map), forced via tiny cap.
    out_split = jax.block_until_ready(
        vit_embedding_forward(x, conv_w, conv_b, pe, (fh, fw), row_cap=8))
    assert float(jnp.max(jnp.abs(out_split - ref))) < 5e-3

    # 5) seq not a multiple of 8 (seq = 9): padding + output-slice path.
    H9 = W9 = 12
    seq9 = (H9 // fh) * (W9 // fw)       # 9
    x9 = jax.random.normal(k_x9, (B, C, H9, W9), dtype=jnp.float32)
    pe9 = jax.random.normal(k_pe9, (1, seq9, hidden), dtype=jnp.float32)
    ref9 = _ref_forward(x9, conv_w, conv_b, pe9, (fh, fw))
    out9 = jax.block_until_ready(vit_embedding_forward(x9, conv_w, conv_b, pe9, (fh, fw)))
    assert out9.shape == (B, seq9, hidden)
    assert float(jnp.max(jnp.abs(out9 - ref9))) < 5e-3

    print("KERNEL_OK")
</pallas_src>

<mosaic_0001>
module attributes {stable_mosaic.version = 11 : i64} {
  func.func @_patch_embed_kernel(%arg0: i32, %arg1: memref<16x128xf32, #tpu.memory_space<vmem>>, %arg2: memref<128x32xf32, #tpu.memory_space<vmem>>, %arg3: memref<16x32xf32, #tpu.memory_space<vmem>>, %arg4: memref<16x32xf32, #tpu.memory_space<vmem>>) attributes {dimension_semantics = [#tpu.dimension_semantics<parallel>], iteration_bounds = array<i64: 2>, scalar_prefetch = 0 : i64, scratch_operands = 0 : i64, tpu.core_type = #tpu.core_type<tc>, window_params = [{transform_indices = @transform_0, window_bounds = array<i64: 16, 128>}, {pipeline_mode = #tpu.pipeline_mode<synchronous>, transform_indices = @transform_1, window_bounds = array<i64: 128, 32>}, {pipeline_mode = #tpu.pipeline_mode<synchronous>, transform_indices = @transform_2, window_bounds = array<i64: 16, 32>}, {transform_indices = @transform_3, window_bounds = array<i64: 16, 32>}]} {
    %c0 = arith.constant 0 : index
    %c0_0 = arith.constant 0 : index
    %0 = vector.load %arg1[%c0, %c0_0] : memref<16x128xf32, #tpu.memory_space<vmem>>, vector<16x128xf32>
    %c0_1 = arith.constant 0 : index
    %c0_2 = arith.constant 0 : index
    %1 = vector.load %arg2[%c0_1, %c0_2] : memref<128x32xf32, #tpu.memory_space<vmem>>, vector<128x32xf32>
    %cst = arith.constant dense<0.000000e+00> : vector<16x32xf32>
    %2 = tpu.matmul %0, %1, %cst {dimension_numbers = #tpu.dot_dimension_numbers<[1], [0], [0], [1], [0, 0, 1, 1], [], []>} : vector<16x128xf32>, vector<128x32xf32>, vector<16x32xf32> -> vector<16x32xf32>
    %c0_3 = arith.constant 0 : index
    %c0_4 = arith.constant 0 : index
    %3 = vector.load %arg3[%c0_3, %c0_4] : memref<16x32xf32, #tpu.memory_space<vmem>>, vector<16x32xf32>
    %4 = arith.addf %2, %3 : vector<16x32xf32>
    %c0_5 = arith.constant 0 : index
    %c0_6 = arith.constant 0 : index
    %5 = vector.load %arg4[%c0_5, %c0_6] : memref<16x32xf32, #tpu.memory_space<vmem>>, vector<16x32xf32>
    tpu.vector_store %arg4[%c0_5, %c0_6], %4 {strides = array<i32>} : memref<16x32xf32, #tpu.memory_space<vmem>>, vector<16x32xf32>,
    return
  }
  func.func @transform_0(%arg0: i32) -> (i32, i32) {
    %c0_i32 = arith.constant 0 : i32
    %c0_i32_0 = arith.constant 0 : i32
    return %arg0, %c0_i32 : i32, i32
  }
  func.func @transform_1(%arg0: i32) -> (i32, i32) {
    %c0_i32 = arith.constant 0 : i32
    %c0_i32_0 = arith.constant 0 : i32
    %c0_i32_1 = arith.constant 0 : i32
    return %c0_i32, %c0_i32_0 : i32, i32
  }
  func.func @transform_2(%arg0: i32) -> (i32, i32) {
    %c0_i32 = arith.constant 0 : i32
    %c0_i32_0 = arith.constant 0 : i32
    %c0_i32_1 = arith.constant 0 : i32
    return %c0_i32, %c0_i32_0 : i32, i32
  }
  func.func @transform_3(%arg0: i32) -> (i32, i32) {
    %c0_i32 = arith.constant 0 : i32
    %c0_i32_0 = arith.constant 0 : i32
    return %arg0, %c0_i32 : i32, i32
  }
}

</mosaic_0001>

<llo_original>
// kernel: tpu_custom_call.1
$region0: #{tpu_custom_call.1}
  #allocation0 [shape = 'u32[]', space=smem, size = 0x4, offset = 0x4, fixed_abs, tag = 'smem constant byte address 0x4 - core index']
  #allocation1 [shape = 'u32[144,128]{1,0:T(1,128)}', space=vmem, size = 0x12000, scoped, tag = 'internal scratch']
  %s0 = inlined_call_operand.vmem [shape: f32[32,128], index: 0, kind: input, shape index: {}]
  %s1 = inlined_call_operand.vmem [shape: f32[128,32], index: 1, kind: input, shape index: {}]
  %s2 = inlined_call_operand.vmem [shape: f32[16,32], index: 2, kind: input, shape index: {}]
  %s3 = inlined_call_operand.hbm [shape: f32[32,32], index: 3, kind: output, shape index: {}]
  %s4 = sld [smem:[#allocation0]]
  $region45: #{tpu_custom_call.1} parent=0
    _
  %s6 = ssub.s32 1, %s4
  %s7 = scalar_select 0, %s6, %s4
  $region1: #{tpu_custom_call.1} parent=0
    #allocation2 [shape = 'u8[16384]{0}', space=vmem, size = 0x4000, scoped, tag = 'output window, operand 0']
    #allocation3 [shape = 's32[2]{0}', space=sflag, size = 0x8, scoped, tag = 'scoped memory for tpu_custom_call.1']
    %8 = vsyncpa [#allocation3], 0
    %s9 = scalar_lea.sflag [#allocation3], 1
    %10 = vsyncpa %s9, 0
    loop: start=0, step=1, limit=4
    $region2: #{tpu_custom_call.1} parent=1 // loop_pre_header
      _
    $region3: #{tpu_custom_call.1} parent=1 // loop_header
      %s12 = sphi 0, %s16
      %p13 = scmp.ge.s32.totalorder %s12, 4
      %s22 = sphi 0, %s24
      %s25 = sphi 0, %s22
      %s26 = sphi 0, %s25
      %s42 = sphi 0, %s26
      %s46 = sphi 0, %s46
      %s48 = sphi 0, %s46
      %s49 = sphi 0, %s48
      %s63 = sphi 0, %s49
      %s67 = sphi 0, %s67
      %s69 = sphi 0, %s67
      %s70 = sphi 0, %s69
      %s84 = sphi 0, %s70
      %s90 = sphi 0, %s92
      %s93 = sphi 0, %s90
      %s94 = sphi 0, %s93
      %s110 = sphi 0, %s94
    $region4: #{tpu_custom_call.1} parent=1 // loop_header_branch
      %15 = sbr.rel (%p13) target = $region8
    $region5: #{tpu_custom_call.1} parent=1 // loop_body
      %s17 = ssub.s32 %s12, 1
      %s18 = ssub.s32 %s12, 2
      %s19 = sadd.s32 %s12, 1
      %s20 = ssub.s32 %s12, %s19
      %p21 = scmp.eq.s32.totalorder %s20, 0
      %s23 = sadd.s32 %s22, 1
      %s24 = scalar_select %p21, %s22, %s23
      %p27 = pneg %p21
      %p28 = scmp.eq.s32.totalorder %s12, 1
      %p29 = por %p27, %p28
      %p30 = scmp.ne.s32.totalorder %s22, %s25
      %p31 = scmp.eq.s32.totalorder %s12, 0
      %p32 = por %p30, %p31
      %p33 = scmp.ne.s32.totalorder %s22, %s25
      %p34 = scmp.eq.s32.totalorder %s17, 1
      %p35 = por %p33, %p34
      %p36 = scmp.ne.s32.totalorder %s25, %s26
      %p37 = scmp.eq.s32.totalorder %s17, 0
      %p38 = por %p36, %p37
      %p39 = scmp.ne.s32.totalorder %s25, %s26
      %p40 = scmp.eq.s32.totalorder %s18, 1
      %p41 = por %p39, %p40
      %p43 = scmp.ne.s32.totalorder %s26, %s42
      %p44 = scmp.eq.s32.totalorder %s18, 0
      %p45 = por %p43, %p44
      %s47 = sadd.s32 %s46, 1
      %p50 = scmp.eq.s32.totalorder %s12, 1
      %p51 = scmp.ne.s32.totalorder %s46, %s48
      %p52 = scmp.eq.s32.totalorder %s12, 0
      %p53 = por %p51, %p52
      %p54 = scmp.ne.s32.totalorder %s46, %s48
      %p55 = scmp.eq.s32.totalorder %s17, 1
      %p56 = por %p54, %p55
      %p57 = scmp.ne.s32.totalorder %s48, %s49
      %p58 = scmp.eq.s32.totalorder %s17, 0
      %p59 = por %p57, %p58
      %p60 = scmp.ne.s32.totalorder %s48, %s49
      %p61 = scmp.eq.s32.totalorder %s18, 1
      %p62 = por %p60, %p61
      %p64 = scmp.ne.s32.totalorder %s49, %s63
      %p65 = scmp.eq.s32.totalorder %s18, 0
      %p66 = por %p64, %p65
      %s68 = sadd.s32 %s67, 1
      %p71 = scmp.eq.s32.totalorder %s12, 1
      %p72 = scmp.ne.s32.totalorder %s67, %s69
      %p73 = scmp.eq.s32.totalorder %s12, 0
      %p74 = por %p72, %p73
      %p75 = scmp.ne.s32.totalorder %s67, %s69
      %p76 = scmp.eq.s32.totalorder %s17, 1
      %p77 = por %p75, %p76
      %p78 = scmp.ne.s32.totalorder %s69, %s70
      %p79 = scmp.eq.s32.totalorder %s17, 0
      %p80 = por %p78, %p79
      %p81 = scmp.ne.s32.totalorder %s69, %s70
      %p82 = scmp.eq.s32.totalorder %s18, 1
      %p83 = por %p81, %p82
      %p85 = scmp.ne.s32.totalorder %s70, %s84
      %p86 = scmp.eq.s32.totalorder %s18, 0
      %p87 = por %p85, %p86
      %s88 = ssub.s32 %s12, %s19
      %p89 = scmp.eq.s32.totalorder %s88, 0
      %s91 = sadd.s32 %s90, 1
      %s92 = scalar_select %p89, %s90, %s91
      %p95 = pneg %p89
      %p96 = scmp.eq.s32.totalorder %s12, 1
      %p97 = por %p95, %p96
      %p98 = scmp.ne.s32.totalorder %s90, %s93
      %p99 = scmp.eq.s32.totalorder %s12, 0
      %p100 = por %p98, %p99
      %p101 = scmp.ne.s32.totalorder %s90, %s93
      %p102 = scmp.eq.s32.totalorder %s17, 1
      %p103 = por %p101, %p102
      %p104 = scmp.ne.s32.totalorder %s93, %s94
      %p105 = scmp.eq.s32.totalorder %s17, 0
      %p106 = por %p104, %p105
      %p107 = scmp.ne.s32.totalorder %s93, %s94
      %p108 = scmp.eq.s32.totalorder %s18, 1
      %p109 = por %p107, %p108
      %p111 = scmp.ne.s32.totalorder %s94, %s110
      %p112 = scmp.eq.s32.totalorder %s18, 0
      %p113 = por %p111, %p112
      %p114 = scmp.le.s32.totalorder 1, %s12
      %p115 = scmp.lt.s32.totalorder %s12, 3
      %p116 = pnand %p114, %p115
      %p117 = pneg %p116
      // Predicated region
      $region9: #{tpu_custom_call.1} parent=5 // pred_check
        _
      $region10: #{tpu_custom_call.1} parent=5 // pred_check_branch
        %119 = sbr.rel (%p116) target = $region12
      $region11: #{tpu_custom_call.1} parent=5 // pred_region
        %s120 = ssub.s32 %s12, 1
        // Predicated region
        $region13: #{tpu_custom_call.1} parent=11 // pred_check
          %p121 = pneg %p59
        $region14: #{tpu_custom_call.1} parent=11 // pred_check_branch
          %123 = sbr.rel (%p121) target = $region16
        $region15: #{tpu_custom_call.1} parent=11 // pred_region
          _
        $region16: #{tpu_custom_call.1} parent=11 // pred_fallthru
          _
        // Predicated region
        $region17: #{tpu_custom_call.1} parent=11 // pred_check
          %p124 = pneg %p80
        $region18: #{tpu_custom_call.1} parent=11 // pred_check_branch
          %126 = sbr.rel (%p124) target = $region20
        $region19: #{tpu_custom_call.1} parent=11 // pred_region
          _
        $region20: #{tpu_custom_call.1} parent=11 // pred_fallthru
          _
      $region12: #{tpu_custom_call.1} parent=5 // pred_fallthru
        _
      %p127 = scmp.lt.s32.totalorder %s12, 2
      // Predicated region
      $region21: #{tpu_custom_call.1} parent=5 // pred_check
        %p128 = pneg %p127
      $region22: #{tpu_custom_call.1} parent=5 // pred_check_branch
        %130 = sbr.rel (%p128) target = $region24
      $region23: #{tpu_custom_call.1} parent=5 // pred_region
        // Predicated region
        $region25: #{tpu_custom_call.1} parent=23 // pred_check
          %p131 = pneg %p32
        $region26: #{tpu_custom_call.1} parent=23 // pred_check_branch
          %133 = sbr.rel (%p131) target = $region28
        $region27: #{tpu_custom_call.1} parent=23 // pred_region
          %s134 = smul.u32 2, %s12
          %p135 = scmp.lt.s32.totalorder %s134, 3
          %s136 = scalar_select %p135, %s134, 3
          %s137 = smul.addr %s136, 8
          %s138 = scalar_lea.vmem %s0, %s137
          %s139 = smul.u32 2, %s12
        $region28: #{tpu_custom_call.1} parent=23 // pred_fallthru
          _
      $region24: #{tpu_custom_call.1} parent=5 // pred_fallthru
        _
      %p140 = scmp.le.s32.totalorder 1, %s12
      %p141 = scmp.lt.s32.totalorder %s12, 3
      %p142 = pnand %p140, %p141
      %p143 = pneg %p142
      // Predicated region
      $region29: #{tpu_custom_call.1} parent=5 // pred_check
        _
      $region30: #{tpu_custom_call.1} parent=5 // pred_check_branch
        %145 = sbr.rel (%p142) target = $region32
      $region31: #{tpu_custom_call.1} parent=5 // pred_region
        %s146 = ssub.s32 %s12, 1
        %s147 = smul.u32 2, %s17
        %p148 = scmp.lt.s32.totalorder %s147, 3
        %s149 = scalar_select %p148, %s147, 3
        %s150 = smul.addr %s149, 8
        %s151 = scalar_lea.vmem %s0, %s150
        %p152 = pneg %p38
        %p153 = pneg %p35
        %p154 = pneg %p59
        %p155 = pneg %p56
        %p156 = pneg %p80
        %p157 = pneg %p77
        %p158 = pneg %p106
        %p159 = pneg %p103
        %s160 = sand.u32 %s93, 1
        %s161 = scalar_lea.sflag [#allocation3], %s160
        %s162 = sand.u32 %s93, 1
        %s163 = smul.addr %s162, 16
        %s164 = scalar_lea.vmem [#allocation2], %s163
        %s165 = smul.u32 2, %s17
        %p166 = scmp.lt.s32.totalorder %s165, 3
        %s167 = scalar_select %p166, %s165, 3
        %s168 = smul.addr %s167, 8
        %s169 = scalar_lea.vmem %s0, %s168
        %s170 = smul.u32 2, %s17
        %s171 = smul.u32 2, %s17
        %v172 = vld [vmem:[%s169] sm:$0xff]
        %v173 = vld [vmem:[%s169 + $0x8] sm:$0xff]
        %v174 = vld [vmem:[%s1] sm:$0xff]
        %v175 = vld [vmem:[%s1 + $0x8] sm:$0xff]
        %v176 = vld [vmem:[%s1 + $0x10] sm:$0xff]
        %v177 = vld [vmem:[%s1 + $0x18] sm:$0xff]
        %v178 = vld [vmem:[%s1 + $0x20] sm:$0xff]
        %v179 = vld [vmem:[%s1 + $0x28] sm:$0xff]
        %v180 = vld [vmem:[%s1 + $0x30] sm:$0xff]
        %v181 = vld [vmem:[%s1 + $0x38] sm:$0xff]
        %v182 = vld [vmem:[%s1 + $0x40] sm:$0xff]
        %v183 = vld [vmem:[%s1 + $0x48] sm:$0xff]
        %v184 = vld [vmem:[%s1 + $0x50] sm:$0xff]
        %v185 = vld [vmem:[%s1 + $0x58] sm:$0xff]
        %v186 = vld [vmem:[%s1 + $0x60] sm:$0xff]
        %v187 = vld [vmem:[%s1 + $0x68] sm:$0xff]
        %v188 = vld [vmem:[%s1 + $0x70] sm:$0xff]
        %v189 = vld [vmem:[%s1 + $0x78] sm:$0xff]
        %v190 = vld [vmem:[%s2] sm:$0xff]
        %v191 = vld [vmem:[%s2 + $0x8] sm:$0xff]
        %192 = vmatprep.subr.mxu0 0.0
        %193 = vmatpush1.msra.mxu0 %v174
        %194 = vmatprep.subr.mxu0 0.0
        %195 = vmatpush1.msra.mxu0 %v175
        %196 = vmatprep.subr.mxu0 0.0
        %197 = vmatpush1.msra.mxu0 %v176
        %198 = vmatprep.subr.mxu0 0.0
        %199 = vmatpush1.msra.mxu0 %v177
        %200 = vmatprep.subr.mxu0 0.0
        %201 = vmatpush1.msra.mxu0 %v178
        %202 = vmatprep.subr.mxu0 0.0
        %203 = vmatpush1.msra.mxu0 %v179
        %204 = vmatprep.subr.mxu0 0.0
        %205 = vmatpush1.msra.mxu0 %v180
        %206 = vmatprep.subr.mxu0 0.0
        %207 = vmatpush1.msra.mxu0 %v181
        %208 = vmatprep.subr.mxu0 0.0
        %209 = vmatpush1.msra.mxu0 %v182
        %210 = vmatprep.subr.mxu0 0.0
        %211 = vmatpush1.msra.mxu0 %v183
        %212 = vmatprep.subr.mxu0 0.0
        %213 = vmatpush1.msra.mxu0 %v184
        %214 = vmatprep.subr.mxu0 0.0
        %215 = vmatpush1.msra.mxu0 %v185
        %216 = vmatprep.subr.mxu0 0.0
        %217 = vmatpush1.msra.mxu0 %v186
        %218 = vmatprep.subr.mxu0 0.0
        %219 = vmatpush1.msra.mxu0 %v187
        %220 = vmatprep.subr.mxu0 0.0
        %221 = vmatpush1.msra.mxu0 %v188
        %222 = vmatprep.subr.mxu0 0.0
        %223 = vmatpush1.msra.mxu0 %v189
        %224 = vmatprep.subr.mxu0 0.0
        %225 = vmatpush1.msra.mxu0 0.0
        %226 = vmatprep.subr.mxu0 0.0
        %227 = vmatpush1.msra.mxu0 0.0
        %228 = vmatprep.subr.mxu0 0.0
        %229 = vmatpush1.msra.mxu0 0.0
        %230 = vmatprep.subr.mxu0 0.0
        %231 = vmatpush1.msra.mxu0 0.0
        %232 = vmatprep.subr.mxu0 0.0
        %233 = vmatpush1.msra.mxu0 0.0
        %234 = vmatprep.subr.mxu0 0.0
        %235 = vmatpush1.msra.mxu0 0.0
        %236 = vmatprep.subr.mxu0 0.0
        %237 = vmatpush1.msra.mxu0 0.0
        %238 = vmatprep.subr.mxu0 0.0
        %239 = vmatpush1.msra.mxu0 0.0
        %240 = vmatprep.subr.mxu0 0.0
        %241 = vmatpush1.msra.mxu0 0.0
        %242 = vmatprep.subr.mxu0 0.0
        %243 = vmatpush1.msra.mxu0 0.0
        %244 = vmatprep.subr.mxu0 0.0
        %245 = vmatpush1.msra.mxu0 0.0
        %246 = vmatprep.subr.mxu0 0.0
        %247 = vmatpush1.msra.mxu0 0.0
        %248 = vmatprep.subr.mxu0 0.0
        %249 = vmatpush1.msra.mxu0 0.0
        %250 = vmatprep.subr.mxu0 0.0
        %251 = vmatpush1.msra.mxu0 0.0
        %252 = vmatprep.subr.mxu0 0.0
        %253 = vmatpush1.msra.mxu0 0.0
        %254 = vmatprep.subr.mxu0 0.0
        %255 = vmatpush1.msra.mxu0 0.0
        %256 = vmatprep.mubr.f32.mxu0 0.0
        %257 = vmatmul.mubr.f32.gmra.mrb[0].mxu0 %v172
        %v258 = vpop.f32.mrb[0].mxu0
        %v259 = vadd.f32 %v190, %v258
        %v260 = vpop.f32.mrb[0].mxu0
        %261 = vmatprep.mubr.f32.mxu0 0.0
        %262 = vmatmul.mubr.f32.gmra.mrb[0].mxu0 %v173
        %v263 = vpop.f32.mrb[0].mxu0
        %v264 = vadd.f32 %v191, %v263
        %v265 = vpop.f32.mrb[0].mxu0
        %266 = vdwg.mxu0
        %vm267 = vcmask 261120
        %268 = vst.msk [vmem:[%s164] sm:$0xff] %vm267, %v259
        %269 = vst.msk [vmem:[%s164 + $0x8] sm:$0xff] %vm267, %v264
        %s270 = sand.u32 %s93, 1
        %s271 = scalar_lea.sflag [#allocation3], %s270
        %s272 = sand.u32 %s93, 1
        %s273 = smul.addr %s272, 16
        %s274 = scalar_lea.vmem [#allocation2], %s273
        // Predicated region
        $region33: #{tpu_custom_call.1} parent=31 // pred_check
          %p275 = pneg %p103
        $region34: #{tpu_custom_call.1} parent=31 // pred_check_branch
          %277 = sbr.rel (%p275) target = $region36
        $region35: #{tpu_custom_call.1} parent=31 // pred_region
          %s278 = smul.u32 2, %s17
          %s280 = ssub.s32 256, 256
          %281 = vsyncadd %s271, %s280
          %s282 = smul.addr %s278, 128
          %s283 = scalar_lea.hbm %s3, %s282
          %s284 = sshll.u32 %s274, 4
          %s285 = int_to_ptr.vmem [resolvable:$true] %s284
          %290 = dma.vmem_to_hbm [thread:$0]  %s285, 256, %s283, %s271, 128, 128, 8
        $region36: #{tpu_custom_call.1} parent=31 // pred_fallthru
          _
      $region32: #{tpu_custom_call.1} parent=5 // pred_fallthru
        _
      %p291 = scmp.le.s32.totalorder 2, %s12
      // Predicated region
      $region37: #{tpu_custom_call.1} parent=5 // pred_check
        %p292 = pneg %p291
      $region38: #{tpu_custom_call.1} parent=5 // pred_check_branch
        %294 = sbr.rel (%p292) target = $region40
      $region39: #{tpu_custom_call.1} parent=5 // pred_region
        %s295 = ssub.s32 %s12, 2
        // Predicated region
        $region41: #{tpu_custom_call.1} parent=39 // pred_check
          %p296 = pneg %p109
        $region42: #{tpu_custom_call.1} parent=39 // pred_check_branch
          %298 = sbr.rel (%p296) target = $region44
        $region43: #{tpu_custom_call.1} parent=39 // pred_region
          %s299 = sand.u32 %s94, 1
          %s300 = scalar_lea.sflag [#allocation3], %s299
          %s301 = sand.u32 %s94, 1
          %s302 = smul.addr %s301, 16
          %s303 = scalar_lea.vmem [#allocation2], %s302
          %304 = dma.done %s300, 256
        $region44: #{tpu_custom_call.1} parent=39 // pred_fallthru
          _
      $region40: #{tpu_custom_call.1} parent=5 // pred_fallthru
        _
    $region6: #{tpu_custom_call.1} parent=1 // loop_footer
      %s16 = sadd.s32 1, %s12
    $region7: #{tpu_custom_call.1} parent=1 // loop_footer_branch
      %11 = sbr.rel target = $region3
    $region8: #{tpu_custom_call.1} parent=1 // loop_exit
      _
    %305 = vsyncpa [#allocation3], 1
    %s306 = scalar_lea.sflag [#allocation3], 1
    %307 = vsyncpa %s306, 1

</llo_original>
